<compile_context>
chip_gen: v7x
topology: tpu7x:2x2x1
jax: 0.10.0
libtpu: 0.0.40
codegen_flags: <defaults>
</compile_context>

<pallas_src>
import jax
import jax.numpy as jnp
from jax.experimental import pallas as pl
from jax.experimental.pallas import tpu as pltpu

LN_EPS = 1e-5


# --------------------------------------------------------------------------- kernel

def _importance_kernel(x_ref,
                       w0_ref, b0_ref,
                       w1_ref, b1_ref,
                       w2_ref, b2_ref,
                       o_ref):
    """Fused (LN -> Linear -> ReLU) x2 -> LN -> Linear -> Sigmoid on one row tile.

    LN affine is pre-folded into the weights/biases, so LN here only normalizes.
    Matmuls run bf16 x bf16 on the MXU with f32 accumulation.
    """

    def layernorm(h):
        mu = jnp.mean(h, axis=-1, keepdims=True)
        d = h - mu
        var = jnp.mean(d * d, axis=-1, keepdims=True)
        return d * jax.lax.rsqrt(var + LN_EPS)

    h = x_ref[...].astype(jnp.float32)

    # block 0: LN -> (Dropout = identity) -> Linear -> ReLU
    h = layernorm(h)
    h = jnp.dot(h.astype(jnp.bfloat16), w0_ref[...],
                preferred_element_type=jnp.float32) + b0_ref[...]
    h = jnp.maximum(h, 0.0)

    # block 1: LN -> (Dropout = identity) -> Linear -> ReLU
    h = layernorm(h)
    h = jnp.dot(h.astype(jnp.bfloat16), w1_ref[...],
                preferred_element_type=jnp.float32) + b1_ref[...]
    h = jnp.maximum(h, 0.0)

    # output block: LN -> Linear (no ReLU, no dropout)
    h = layernorm(h)
    h = jnp.dot(h.astype(jnp.bfloat16), w2_ref[...],
                preferred_element_type=jnp.float32) + b2_ref[...]

    # Natural [row_tile, out_dim] layout (no in-kernel transpose, no wrapper transpose).
    o_ref[...] = jax.nn.sigmoid(h).astype(o_ref.dtype)


# --------------------------------------------------------------------------- wrapper

def _round_up(n, m):
    return (n + m - 1) // m * m


def _choose_row_tile(rows, row_tile):
    """Pick a 128-aligned row tile; prefer >=2 grid steps so v7x megacore has work."""
    row_tile = max(128, _round_up(row_tile, 128))
    rows128 = _round_up(max(rows, 1), 128)
    if rows128 <= row_tile:
        if rows128 >= 256:
            # split the single block in two -> 2 parallel grid steps for the 2nd TC
            return _round_up(rows128 // 2, 128)
        return rows128
    return row_tile


def _fold_ln_into_linear(gamma, beta, w, b, w_dtype=jnp.bfloat16):
    """LN(x)*W + b == normalize(x) @ (diag(gamma) W) + (b + beta @ W)."""
    w_f = (gamma.reshape(-1, 1) * w).astype(w_dtype)
    b_f = (b + beta @ w).astype(jnp.float32)
    return w_f, b_f


def importance_score_forward(x, params, *, row_tile=4096, out_dtype=None,
                             stream_dtype=None, matmul_dtype=jnp.bfloat16):
    """x: [..., input_dim] (any leading dims). Returns sigmoid(MLP(x)): [..., out_dim]."""
    (g0, be0, w0, b0, g1, be1, w1, b1, g2, be2, w2, b2) = params
    in_dim = x.shape[-1]
    out_dim = w2.shape[-1]
    lead = x.shape[:-1]
    out_dtype = out_dtype if out_dtype is not None else x.dtype

    # Fold every LayerNorm affine into the Linear that follows it; weights to bf16 once.
    w0f, b0f = _fold_ln_into_linear(g0, be0, w0, b0, matmul_dtype)
    w1f, b1f = _fold_ln_into_linear(g1, be1, w1, b1, matmul_dtype)
    w2f, b2f = _fold_ln_into_linear(g2, be2, w2, b2, matmul_dtype)

    x2 = x.reshape(-1, in_dim)
    if stream_dtype is not None:          # opt-in only; default keeps input precision
        x2 = x2.astype(stream_dtype)
    rows = x2.shape[0]

    rt = _choose_row_tile(rows, row_tile)
    rows_p = _round_up(rows, rt)
    if rows_p != rows:
        # Padded rows are computed and dropped; LN of a zero row is finite thanks to eps.
        x2 = jnp.pad(x2, ((0, rows_p - rows), (0, 0)))

    grid = (rows_p // rt,)

    def param_spec(p):
        # full (tiny) parameter tile, constant index_map -> DMA'd once, stays resident
        return pl.BlockSpec(p.shape, lambda i: (0, 0))

    # Explicit VMEM limit only needed for very large tiles (v5e default scoped = 16 MiB).
    vmem_limit = (64 << 20) if rt >= 8192 else None

    out = pl.pallas_call(
        _importance_kernel,
        out_shape=jax.ShapeDtypeStruct((rows_p, out_dim), out_dtype),
        grid_spec=pltpu.PrefetchScalarGridSpec(
            num_scalar_prefetch=0,
            grid=grid,
            in_specs=[pl.BlockSpec((rt, in_dim), lambda i: (i, 0)),
                      param_spec(w0f), param_spec(b0f),
                      param_spec(w1f), param_spec(b1f),
                      param_spec(w2f), param_spec(b2f)],
            out_specs=pl.BlockSpec((rt, out_dim), lambda i: (i, 0)),
        ),
        compiler_params=pltpu.CompilerParams(
            dimension_semantics=("parallel",),
            vmem_limit_bytes=vmem_limit),
    )(x2, w0f, b0f, w1f, b1f, w2f, b2f)

    return out[:rows].reshape(*lead, out_dim)


# --------------------------------------------------------------------------- init + refs

def init_params(key, input_dim, hidden_size, out_dim):
    """Matches the torch module:
       - Linear weights: xavier_normal_ with gain=calculate_gain('relu')=sqrt(2)
       - Linear biases : torch default U(-1/sqrt(fan_in), 1/sqrt(fan_in))
       - LayerNorm     : weight=1, bias=0
       Weights stored as [in, out] (transposed vs torch [out, in])."""
    dims = [input_dim] + list(hidden_size) + [out_dim]
    gain = jnp.sqrt(2.0)
    params = []
    keys = jax.random.split(key, 2 * (len(dims) - 1))
    for li in range(len(dims) - 1):
        fan_in, fan_out = dims[li], dims[li + 1]
        gamma = jnp.ones((1, fan_in), jnp.float32)
        beta = jnp.zeros((1, fan_in), jnp.float32)
        std = gain * jnp.sqrt(2.0 / (fan_in + fan_out))
        w = std * jax.random.normal(keys[2 * li], (fan_in, fan_out), jnp.float32)
        bound = 1.0 / jnp.sqrt(fan_in)
        b = jax.random.uniform(keys[2 * li + 1], (1, fan_out), jnp.float32,
                               minval=-bound, maxval=bound)
        params.extend([gamma, beta, w, b])
    return tuple(params)


def reference_forward(x, params):
    """Pure-f32 JAX reference (module eval() semantics)."""
    (g0, be0, w0, b0, g1, be1, w1, b1, g2, be2, w2, b2) = params

    def ln(h, g, b):
        mu = jnp.mean(h, axis=-1, keepdims=True)
        var = jnp.mean((h - mu) ** 2, axis=-1, keepdims=True)
        return (h - mu) * jax.lax.rsqrt(var + LN_EPS) * g + b

    h = x.astype(jnp.float32)
    h = jnp.maximum(ln(h, g0, be0) @ w0 + b0, 0.0)
    h = jnp.maximum(ln(h, g1, be1) @ w1 + b1, 0.0)
    h = ln(h, g2, be2) @ w2 + b2
    return jax.nn.sigmoid(h)


def reference_forward_quant(x, params, matmul_dtype=jnp.bfloat16):
    """Reference that mimics the kernel's exact math (folded LN affine + bf16 matmuls)."""
    (g0, be0, w0, b0, g1, be1, w1, b1, g2, be2, w2, b2) = params
    w0f, b0f = _fold_ln_into_linear(g0, be0, w0, b0, matmul_dtype)
    w1f, b1f = _fold_ln_into_linear(g1, be1, w1, b1, matmul_dtype)
    w2f, b2f = _fold_ln_into_linear(g2, be2, w2, b2, matmul_dtype)

    def ln(h):
        mu = jnp.mean(h, axis=-1, keepdims=True)
        d = h - mu
        var = jnp.mean(d * d, axis=-1, keepdims=True)
        return d * jax.lax.rsqrt(var + LN_EPS)

    def dot(h, w):
        return jnp.dot(h.astype(matmul_dtype), w, preferred_element_type=jnp.float32)

    h = x.astype(jnp.float32)
    h = jnp.maximum(dot(ln(h), w0f) + b0f, 0.0)
    h = jnp.maximum(dot(ln(h), w1f) + b1f, 0.0)
    h = dot(ln(h), w2f) + b2f
    return jax.nn.sigmoid(h)


# --------------------------------------------------------------------------- main

if __name__ == "__main__":
    # x: [batch=2, seq=8, input_dim=32]; hidden_size=[64, 64] (hidden_layers=2); out_dim=8.
    batch, seq, input_dim = 2, 8, 32
    hidden_size = [64, 64]
    out_dim = 8

    key = jax.random.PRNGKey(0)
    kx, kp, kx2 = jax.random.split(key, 3)
    x = jax.random.normal(kx, (batch, seq, input_dim), jnp.float32)
    params = init_params(kp, input_dim, hidden_size, out_dim)

    # --- small case (single tile, padded to 128 rows) ---
    y = importance_score_forward(x, params)
    y = jax.block_until_ready(y)
    assert y.shape == (batch, seq, out_dim)
    y_q = reference_forward_quant(x, params)
    assert jnp.allclose(y, y_q, atol=1e-4, rtol=1e-4), "mismatch vs quant-matched reference (small)"
    y_f = reference_forward(x, params)
    assert jnp.allclose(y, y_f, atol=5e-2), "mismatch vs f32 reference (small)"

    # --- larger, non-divisible case (padding + 2-step parallel grid) ---
    b2_, s2_ = 3, 100  # rows = 300 -> tile 256, padded to 512, grid = 2
    x_big = jax.random.normal(kx2, (b2_, s2_, input_dim), jnp.float32)
    y_big = jax.block_until_ready(importance_score_forward(x_big, params))
    assert y_big.shape == (b2_, s2_, out_dim)
    y_big_q = reference_forward_quant(x_big, params)
    assert jnp.allclose(y_big, y_big_q, atol=1e-4, rtol=1e-4), "mismatch vs quant-matched reference (big)"

    print("KERNEL_OK")
</pallas_src>

<mosaic_0001>
module attributes {stable_mosaic.version = 11 : i64} {
  func.func @_importance_kernel(%arg0: i32, %arg1: memref<128x32xf32, #tpu.memory_space<vmem>>, %arg2: memref<32x64xbf16, #tpu.memory_space<vmem>>, %arg3: memref<1x64xf32, #tpu.memory_space<vmem>>, %arg4: memref<64x64xbf16, #tpu.memory_space<vmem>>, %arg5: memref<1x64xf32, #tpu.memory_space<vmem>>, %arg6: memref<64x8xbf16, #tpu.memory_space<vmem>>, %arg7: memref<1x8xf32, #tpu.memory_space<vmem>>, %arg8: memref<128x8xf32, #tpu.memory_space<vmem>>) attributes {dimension_semantics = [#tpu.dimension_semantics<parallel>], iteration_bounds = array<i64: 1>, scalar_prefetch = 0 : i64, scratch_operands = 0 : i64, tpu.core_type = #tpu.core_type<tc>, window_params = [{transform_indices = @transform_0, window_bounds = array<i64: 128, 32>}, {pipeline_mode = #tpu.pipeline_mode<synchronous>, transform_indices = @transform_1, window_bounds = array<i64: 32, 64>}, {pipeline_mode = #tpu.pipeline_mode<synchronous>, transform_indices = @transform_2, window_bounds = array<i64: 1, 64>}, {pipeline_mode = #tpu.pipeline_mode<synchronous>, transform_indices = @transform_3, window_bounds = array<i64: 64, 64>}, {pipeline_mode = #tpu.pipeline_mode<synchronous>, transform_indices = @transform_4, window_bounds = array<i64: 1, 64>}, {pipeline_mode = #tpu.pipeline_mode<synchronous>, transform_indices = @transform_5, window_bounds = array<i64: 64, 8>}, {pipeline_mode = #tpu.pipeline_mode<synchronous>, transform_indices = @transform_6, window_bounds = array<i64: 1, 8>}, {transform_indices = @transform_7, window_bounds = array<i64: 128, 8>}]} {
    %c0 = arith.constant 0 : index
    %c0_0 = arith.constant 0 : index
    %0 = vector.load %arg1[%c0, %c0_0] : memref<128x32xf32, #tpu.memory_space<vmem>>, vector<128x32xf32>
    %cst = arith.constant dense<0.000000e+00> : vector<128xf32>
    %1 = vector.multi_reduction <add>, %0, %cst [1] : vector<128x32xf32> to vector<128xf32>
    %2 = vector.shape_cast %1 : vector<128xf32> to vector<128x1xf32>
    %cst_1 = arith.constant 3.200000e+01 : f32
    %3 = vector.broadcast %cst_1 : f32 to vector<128x1xf32>
    %4 = arith.divf %2, %3 : vector<128x1xf32>
    %5 = vector.broadcast %4 : vector<128x1xf32> to vector<128x32xf32>
    %6 = arith.subf %0, %5 : vector<128x32xf32>
    %7 = arith.mulf %6, %6 : vector<128x32xf32>
    %cst_2 = arith.constant dense<0.000000e+00> : vector<128xf32>
    %8 = vector.multi_reduction <add>, %7, %cst_2 [1] : vector<128x32xf32> to vector<128xf32>
    %9 = vector.shape_cast %8 : vector<128xf32> to vector<128x1xf32>
    %cst_3 = arith.constant 3.200000e+01 : f32
    %10 = vector.broadcast %cst_3 : f32 to vector<128x1xf32>
    %11 = arith.divf %9, %10 : vector<128x1xf32>
    %cst_4 = arith.constant 9.99999974E-6 : f32
    %12 = vector.broadcast %cst_4 : f32 to vector<128x1xf32>
    %13 = arith.addf %11, %12 : vector<128x1xf32>
    %14 = math.rsqrt %13 : vector<128x1xf32>
    %15 = vector.broadcast %14 : vector<128x1xf32> to vector<128x32xf32>
    %16 = arith.mulf %6, %15 : vector<128x32xf32>
    %17 = arith.truncf %16 : vector<128x32xf32> to vector<128x32xbf16>
    %c0_5 = arith.constant 0 : index
    %c0_6 = arith.constant 0 : index
    %18 = vector.load %arg2[%c0_5, %c0_6] : memref<32x64xbf16, #tpu.memory_space<vmem>>, vector<32x64xbf16>
    %cst_7 = arith.constant dense<0.000000e+00> : vector<128x64xf32>
    %19 = tpu.matmul %17, %18, %cst_7 {dimension_numbers = #tpu.dot_dimension_numbers<[1], [0], [0], [1], [0, 0, 1, 1], [], []>} : vector<128x32xbf16>, vector<32x64xbf16>, vector<128x64xf32> -> vector<128x64xf32>
    %c0_8 = arith.constant 0 : index
    %c0_9 = arith.constant 0 : index
    %20 = vector.load %arg3[%c0_8, %c0_9] : memref<1x64xf32, #tpu.memory_space<vmem>>, vector<1x64xf32>
    %21 = vector.broadcast %20 : vector<1x64xf32> to vector<128x64xf32>
    %22 = arith.addf %19, %21 : vector<128x64xf32>
    %cst_10 = arith.constant 0.000000e+00 : f32
    %23 = vector.broadcast %cst_10 : f32 to vector<128x64xf32>
    %24 = arith.maximumf %22, %23 : vector<128x64xf32>
    %cst_11 = arith.constant dense<0.000000e+00> : vector<128xf32>
    %25 = vector.multi_reduction <add>, %24, %cst_11 [1] : vector<128x64xf32> to vector<128xf32>
    %26 = vector.shape_cast %25 : vector<128xf32> to vector<128x1xf32>
    %cst_12 = arith.constant 6.400000e+01 : f32
    %27 = vector.broadcast %cst_12 : f32 to vector<128x1xf32>
    %28 = arith.divf %26, %27 : vector<128x1xf32>
    %29 = vector.broadcast %28 : vector<128x1xf32> to vector<128x64xf32>
    %30 = arith.subf %24, %29 : vector<128x64xf32>
    %31 = arith.mulf %30, %30 : vector<128x64xf32>
    %cst_13 = arith.constant dense<0.000000e+00> : vector<128xf32>
    %32 = vector.multi_reduction <add>, %31, %cst_13 [1] : vector<128x64xf32> to vector<128xf32>
    %33 = vector.shape_cast %32 : vector<128xf32> to vector<128x1xf32>
    %cst_14 = arith.constant 6.400000e+01 : f32
    %34 = vector.broadcast %cst_14 : f32 to vector<128x1xf32>
    %35 = arith.divf %33, %34 : vector<128x1xf32>
    %cst_15 = arith.constant 9.99999974E-6 : f32
    %36 = vector.broadcast %cst_15 : f32 to vector<128x1xf32>
    %37 = arith.addf %35, %36 : vector<128x1xf32>
    %38 = math.rsqrt %37 : vector<128x1xf32>
    %39 = vector.broadcast %38 : vector<128x1xf32> to vector<128x64xf32>
    %40 = arith.mulf %30, %39 : vector<128x64xf32>
    %41 = arith.truncf %40 : vector<128x64xf32> to vector<128x64xbf16>
    %c0_16 = arith.constant 0 : index
    %c0_17 = arith.constant 0 : index
    %42 = vector.load %arg4[%c0_16, %c0_17] : memref<64x64xbf16, #tpu.memory_space<vmem>>, vector<64x64xbf16>
    %cst_18 = arith.constant dense<0.000000e+00> : vector<128x64xf32>
    %43 = tpu.matmul %41, %42, %cst_18 {dimension_numbers = #tpu.dot_dimension_numbers<[1], [0], [0], [1], [0, 0, 1, 1], [], []>} : vector<128x64xbf16>, vector<64x64xbf16>, vector<128x64xf32> -> vector<128x64xf32>
    %c0_19 = arith.constant 0 : index
    %c0_20 = arith.constant 0 : index
    %44 = vector.load %arg5[%c0_19, %c0_20] : memref<1x64xf32, #tpu.memory_space<vmem>>, vector<1x64xf32>
    %45 = vector.broadcast %44 : vector<1x64xf32> to vector<128x64xf32>
    %46 = arith.addf %43, %45 : vector<128x64xf32>
    %cst_21 = arith.constant 0.000000e+00 : f32
    %47 = vector.broadcast %cst_21 : f32 to vector<128x64xf32>
    %48 = arith.maximumf %46, %47 : vector<128x64xf32>
    %cst_22 = arith.constant dense<0.000000e+00> : vector<128xf32>
    %49 = vector.multi_reduction <add>, %48, %cst_22 [1] : vector<128x64xf32> to vector<128xf32>
    %50 = vector.shape_cast %49 : vector<128xf32> to vector<128x1xf32>
    %cst_23 = arith.constant 6.400000e+01 : f32
    %51 = vector.broadcast %cst_23 : f32 to vector<128x1xf32>
    %52 = arith.divf %50, %51 : vector<128x1xf32>
    %53 = vector.broadcast %52 : vector<128x1xf32> to vector<128x64xf32>
    %54 = arith.subf %48, %53 : vector<128x64xf32>
    %55 = arith.mulf %54, %54 : vector<128x64xf32>
    %cst_24 = arith.constant dense<0.000000e+00> : vector<128xf32>
    %56 = vector.multi_reduction <add>, %55, %cst_24 [1] : vector<128x64xf32> to vector<128xf32>
    %57 = vector.shape_cast %56 : vector<128xf32> to vector<128x1xf32>
    %cst_25 = arith.constant 6.400000e+01 : f32
    %58 = vector.broadcast %cst_25 : f32 to vector<128x1xf32>
    %59 = arith.divf %57, %58 : vector<128x1xf32>
    %cst_26 = arith.constant 9.99999974E-6 : f32
    %60 = vector.broadcast %cst_26 : f32 to vector<128x1xf32>
    %61 = arith.addf %59, %60 : vector<128x1xf32>
    %62 = math.rsqrt %61 : vector<128x1xf32>
    %63 = vector.broadcast %62 : vector<128x1xf32> to vector<128x64xf32>
    %64 = arith.mulf %54, %63 : vector<128x64xf32>
    %65 = arith.truncf %64 : vector<128x64xf32> to vector<128x64xbf16>
    %c0_27 = arith.constant 0 : index
    %c0_28 = arith.constant 0 : index
    %66 = vector.load %arg6[%c0_27, %c0_28] : memref<64x8xbf16, #tpu.memory_space<vmem>>, vector<64x8xbf16>
    %cst_29 = arith.constant dense<0.000000e+00> : vector<128x8xf32>
    %67 = tpu.matmul %65, %66, %cst_29 {dimension_numbers = #tpu.dot_dimension_numbers<[1], [0], [0], [1], [0, 0, 1, 1], [], []>} : vector<128x64xbf16>, vector<64x8xbf16>, vector<128x8xf32> -> vector<128x8xf32>
    %c0_30 = arith.constant 0 : index
    %c0_31 = arith.constant 0 : index
    %68 = vector.load %arg7[%c0_30, %c0_31] : memref<1x8xf32, #tpu.memory_space<vmem>>, vector<1x8xf32>
    %69 = vector.broadcast %68 : vector<1x8xf32> to vector<128x8xf32>
    %70 = arith.addf %67, %69 : vector<128x8xf32>
    %71 = arith.negf %70 : vector<128x8xf32>
    %72 = math.exp %71 : vector<128x8xf32>
    %cst_32 = arith.constant 1.000000e+00 : f32
    %73 = vector.broadcast %cst_32 : f32 to vector<128x8xf32>
    %74 = arith.addf %73, %72 : vector<128x8xf32>
    %75 = arith.divf %73, %74 : vector<128x8xf32>
    %c0_33 = arith.constant 0 : index
    %c0_34 = arith.constant 0 : index
    %76 = vector.load %arg8[%c0_33, %c0_34] : memref<128x8xf32, #tpu.memory_space<vmem>>, vector<128x8xf32>
    tpu.vector_store %arg8[%c0_33, %c0_34], %75 {strides = array<i32>} : memref<128x8xf32, #tpu.memory_space<vmem>>, vector<128x8xf32>,
    return
  }
  func.func @transform_0(%arg0: i32) -> (i32, i32) {
    %c0_i32 = arith.constant 0 : i32
    %c0_i32_0 = arith.constant 0 : i32
    return %arg0, %c0_i32 : i32, i32
  }
  func.func @transform_1(%arg0: i32) -> (i32, i32) {
    %c0_i32 = arith.constant 0 : i32
    %c0_i32_0 = arith.constant 0 : i32
    %c0_i32_1 = arith.constant 0 : i32
    return %c0_i32, %c0_i32_0 : i32, i32
  }
  func.func @transform_2(%arg0: i32) -> (i32, i32) {
    %c0_i32 = arith.constant 0 : i32
    %c0_i32_0 = arith.constant 0 : i32
    %c0_i32_1 = arith.constant 0 : i32
    return %c0_i32, %c0_i32_0 : i32, i32
  }
  func.func @transform_3(%arg0: i32) -> (i32, i32) {
    %c0_i32 = arith.constant 0 : i32
    %c0_i32_0 = arith.constant 0 : i32
    %c0_i32_1 = arith.constant 0 : i32
    return %c0_i32, %c0_i32_0 : i32, i32
  }
  func.func @transform_4(%arg0: i32) -> (i32, i32) {
    %c0_i32 = arith.constant 0 : i32
    %c0_i32_0 = arith.constant 0 : i32
    %c0_i32_1 = arith.constant 0 : i32
    return %c0_i32, %c0_i32_0 : i32, i32
  }
  func.func @transform_5(%arg0: i32) -> (i32, i32) {
    %c0_i32 = arith.constant 0 : i32
    %c0_i32_0 = arith.constant 0 : i32
    %c0_i32_1 = arith.constant 0 : i32
    return %c0_i32, %c0_i32_0 : i32, i32
  }
  func.func @transform_6(%arg0: i32) -> (i32, i32) {
    %c0_i32 = arith.constant 0 : i32
    %c0_i32_0 = arith.constant 0 : i32
    %c0_i32_1 = arith.constant 0 : i32
    return %c0_i32, %c0_i32_0 : i32, i32
  }
  func.func @transform_7(%arg0: i32) -> (i32, i32) {
    %c0_i32 = arith.constant 0 : i32
    %c0_i32_0 = arith.constant 0 : i32
    return %arg0, %c0_i32 : i32, i32
  }
}

</mosaic_0001>

<llo_original>
// kernel: tpu_custom_call.1
$region0: #{tpu_custom_call.1}
  #allocation0 [shape = 'u32[]', space=smem, size = 0x4, offset = 0x4, fixed_abs, tag = 'smem constant byte address 0x4 - core index']
  #allocation1 [shape = 'u32[144,128]{1,0:T(1,128)}', space=vmem, size = 0x12000, scoped, tag = 'internal scratch']
  %s0 = inlined_call_operand.vmem [shape: f32[128,32], index: 0, kind: input, shape index: {}]
  %s1 = inlined_call_operand.vmem [shape: bf16[32,64], index: 1, kind: input, shape index: {}]
  %s2 = inlined_call_operand.vmem [shape: f32[1,64], index: 2, kind: input, shape index: {}]
  %s3 = inlined_call_operand.vmem [shape: bf16[64,64], index: 3, kind: input, shape index: {}]
  %s4 = inlined_call_operand.vmem [shape: f32[1,64], index: 4, kind: input, shape index: {}]
  %s5 = inlined_call_operand.vmem [shape: bf16[64,8], index: 5, kind: input, shape index: {}]
  %s6 = inlined_call_operand.vmem [shape: f32[1,8], index: 6, kind: input, shape index: {}]
  %s7 = inlined_call_operand.vmem [shape: f32[128,8], index: 7, kind: output, shape index: {}]
  %s8 = sld [smem:[#allocation0]]
  $region38: #{tpu_custom_call.1} parent=0
    _
  %s10 = ssub.s32 1, %s8
  %s11 = scalar_select 0, %s10, %s8
  // Predicated region
  $region2: #{tpu_custom_call.1} parent=0 // pred_check
    _
  $region3: #{tpu_custom_call.1} parent=0 // pred_check_branch
    %13 = sbr.rel (0) target = $region5
  $region4: #{tpu_custom_call.1} parent=0 // pred_region
    _
  $region5: #{tpu_custom_call.1} parent=0 // pred_fallthru
    _
  // Predicated region
  $region6: #{tpu_custom_call.1} parent=0 // pred_check
    _
  $region7: #{tpu_custom_call.1} parent=0 // pred_check_branch
    %15 = sbr.rel (0) target = $region9
  $region8: #{tpu_custom_call.1} parent=0 // pred_region
    _
  $region9: #{tpu_custom_call.1} parent=0 // pred_fallthru
    _
  // Predicated region
  $region10: #{tpu_custom_call.1} parent=0 // pred_check
    _
  $region11: #{tpu_custom_call.1} parent=0 // pred_check_branch
    %17 = sbr.rel (0) target = $region13
  $region12: #{tpu_custom_call.1} parent=0 // pred_region
    _
  $region13: #{tpu_custom_call.1} parent=0 // pred_fallthru
    _
  // Predicated region
  $region14: #{tpu_custom_call.1} parent=0 // pred_check
    _
  $region15: #{tpu_custom_call.1} parent=0 // pred_check_branch
    %19 = sbr.rel (0) target = $region17
  $region16: #{tpu_custom_call.1} parent=0 // pred_region
    _
  $region17: #{tpu_custom_call.1} parent=0 // pred_fallthru
    _
  // Predicated region
  $region18: #{tpu_custom_call.1} parent=0 // pred_check
    _
  $region19: #{tpu_custom_call.1} parent=0 // pred_check_branch
    %21 = sbr.rel (0) target = $region21
  $region20: #{tpu_custom_call.1} parent=0 // pred_region
    _
  $region21: #{tpu_custom_call.1} parent=0 // pred_fallthru
    _
  // Predicated region
  $region22: #{tpu_custom_call.1} parent=0 // pred_check
    _
  $region23: #{tpu_custom_call.1} parent=0 // pred_check_branch
    %23 = sbr.rel (0) target = $region25
  $region24: #{tpu_custom_call.1} parent=0 // pred_region
    _
  $region25: #{tpu_custom_call.1} parent=0 // pred_fallthru
    _
  // Predicated region
  $region26: #{tpu_custom_call.1} parent=0 // pred_check
    _
  $region27: #{tpu_custom_call.1} parent=0 // pred_check_branch
    %25 = sbr.rel (0) target = $region29
  $region28: #{tpu_custom_call.1} parent=0 // pred_region
    _
  $region29: #{tpu_custom_call.1} parent=0 // pred_fallthru
    _
  %v27 = vld [vmem:[%s0] sm:$0xff]
  %v28 = vld [vmem:[%s0 + $0x8] sm:$0xff]
  %v29 = vld [vmem:[%s0 + $0x10] sm:$0xff]
  %v30 = vld [vmem:[%s0 + $0x18] sm:$0xff]
  %v31 = vld [vmem:[%s0 + $0x20] sm:$0xff]
  %v32 = vld [vmem:[%s0 + $0x28] sm:$0xff]
  %v33 = vld [vmem:[%s0 + $0x30] sm:$0xff]
  %v34 = vld [vmem:[%s0 + $0x38] sm:$0xff]
  %v35 = vld [vmem:[%s0 + $0x40] sm:$0xff]
  %v36 = vld [vmem:[%s0 + $0x48] sm:$0xff]
  %v37 = vld [vmem:[%s0 + $0x50] sm:$0xff]
  %v38 = vld [vmem:[%s0 + $0x58] sm:$0xff]
  %v39 = vld [vmem:[%s0 + $0x60] sm:$0xff]
  %v40 = vld [vmem:[%s0 + $0x68] sm:$0xff]
  %v41 = vld [vmem:[%s0 + $0x70] sm:$0xff]
  %v42 = vld [vmem:[%s0 + $0x78] sm:$0xff]
  %vm43 = vcmask 261120
  %v44 = vsel %vm43, %v27, 0.0
  %45 = vadd.xlane.f32.xlu0 %v44
  %v46 = vpop.xlane.xlu0 %45
  %v47 = vsel %vm43, %v28, 0.0
  %48 = vadd.xlane.f32.xlu0 %v47
  %v49 = vpop.xlane.xlu0 %48
  %v50 = vsel %vm43, %v29, 0.0
  %51 = vadd.xlane.f32.xlu0 %v50
  %v52 = vpop.xlane.xlu0 %51
  %v53 = vsel %vm43, %v30, 0.0
  %54 = vadd.xlane.f32.xlu0 %v53
  %v55 = vpop.xlane.xlu0 %54
  %v56 = vsel %vm43, %v31, 0.0
  %57 = vadd.xlane.f32.xlu0 %v56
  %v58 = vpop.xlane.xlu0 %57
  %v59 = vsel %vm43, %v32, 0.0
  %60 = vadd.xlane.f32.xlu0 %v59
  %v61 = vpop.xlane.xlu0 %60
  %v62 = vsel %vm43, %v33, 0.0
  %63 = vadd.xlane.f32.xlu0 %v62
  %v64 = vpop.xlane.xlu0 %63
  %v65 = vsel %vm43, %v34, 0.0
  %66 = vadd.xlane.f32.xlu0 %v65
  %v67 = vpop.xlane.xlu0 %66
  %v68 = vsel %vm43, %v35, 0.0
  %69 = vadd.xlane.f32.xlu0 %v68
  %v70 = vpop.xlane.xlu0 %69
  %v71 = vsel %vm43, %v36, 0.0
  %72 = vadd.xlane.f32.xlu0 %v71
  %v73 = vpop.xlane.xlu0 %72
  %v74 = vsel %vm43, %v37, 0.0
  %75 = vadd.xlane.f32.xlu0 %v74
  %v76 = vpop.xlane.xlu0 %75
  %v77 = vsel %vm43, %v38, 0.0
  %78 = vadd.xlane.f32.xlu0 %v77
  %v79 = vpop.xlane.xlu0 %78
  %v80 = vsel %vm43, %v39, 0.0
  %81 = vadd.xlane.f32.xlu0 %v80
  %v82 = vpop.xlane.xlu0 %81
  %v83 = vsel %vm43, %v40, 0.0
  %84 = vadd.xlane.f32.xlu0 %v83
  %v85 = vpop.xlane.xlu0 %84
  %v86 = vsel %vm43, %v41, 0.0
  %87 = vadd.xlane.f32.xlu0 %v86
  %v88 = vpop.xlane.xlu0 %87
  %v89 = vsel %vm43, %v42, 0.0
  %90 = vadd.xlane.f32.xlu0 %v89
  %v91 = vpop.xlane.xlu0 %90
  %v92 = vrcp.pop 32.0
  %v93 = vmul.f32 %v46, %v92
  %v94 = vmul.f32 %v49, %v92
  %v95 = vmul.f32 %v52, %v92
  %v96 = vmul.f32 %v55, %v92
  %v97 = vmul.f32 %v58, %v92
  %v98 = vmul.f32 %v61, %v92
  %v99 = vmul.f32 %v64, %v92
  %v100 = vmul.f32 %v67, %v92
  %v101 = vmul.f32 %v70, %v92
  %v102 = vmul.f32 %v73, %v92
  %v103 = vmul.f32 %v76, %v92
  %v104 = vmul.f32 %v79, %v92
  %v105 = vmul.f32 %v82, %v92
  %v106 = vmul.f32 %v85, %v92
  %v107 = vmul.f32 %v88, %v92
  %v108 = vmul.f32 %v91, %v92
  %v109 = vsub.f32 %v27, %v93
  %v110 = vsub.f32 %v28, %v94
  %v111 = vsub.f32 %v29, %v95
  %v112 = vsub.f32 %v30, %v96
  %v113 = vsub.f32 %v31, %v97
  %v114 = vsub.f32 %v32, %v98
  %v115 = vsub.f32 %v33, %v99
  %v116 = vsub.f32 %v34, %v100
  %v117 = vsub.f32 %v35, %v101
  %v118 = vsub.f32 %v36, %v102
  %v119 = vsub.f32 %v37, %v103
  %v120 = vsub.f32 %v38, %v104
  %v121 = vsub.f32 %v39, %v105
  %v122 = vsub.f32 %v40, %v106
  %v123 = vsub.f32 %v41, %v107
  %v124 = vsub.f32 %v42, %v108
  %v125 = vmul.f32 %v109, %v109
  %v126 = vmul.f32 %v110, %v110
  %v127 = vmul.f32 %v111, %v111
  %v128 = vmul.f32 %v112, %v112
  %v129 = vmul.f32 %v113, %v113
  %v130 = vmul.f32 %v114, %v114
  %v131 = vmul.f32 %v115, %v115
  %v132 = vmul.f32 %v116, %v116
  %v133 = vmul.f32 %v117, %v117
  %v134 = vmul.f32 %v118, %v118
  %v135 = vmul.f32 %v119, %v119
  %v136 = vmul.f32 %v120, %v120
  %v137 = vmul.f32 %v121, %v121
  %v138 = vmul.f32 %v122, %v122
  %v139 = vmul.f32 %v123, %v123
  %v140 = vmul.f32 %v124, %v124
  %v141 = vsel %vm43, %v125, 0.0
  %142 = vadd.xlane.f32.xlu0 %v141
  %v143 = vpop.xlane.xlu0 %142
  %v144 = vsel %vm43, %v126, 0.0
  %145 = vadd.xlane.f32.xlu0 %v144
  %v146 = vpop.xlane.xlu0 %145
  %v147 = vsel %vm43, %v127, 0.0
  %148 = vadd.xlane.f32.xlu0 %v147
  %v149 = vpop.xlane.xlu0 %148
  %v150 = vsel %vm43, %v128, 0.0
  %151 = vadd.xlane.f32.xlu0 %v150
  %v152 = vpop.xlane.xlu0 %151
  %v153 = vsel %vm43, %v129, 0.0
  %154 = vadd.xlane.f32.xlu0 %v153
  %v155 = vpop.xlane.xlu0 %154
  %v156 = vsel %vm43, %v130, 0.0
  %157 = vadd.xlane.f32.xlu0 %v156
  %v158 = vpop.xlane.xlu0 %157
  %v159 = vsel %vm43, %v131, 0.0
  %160 = vadd.xlane.f32.xlu0 %v159
  %v161 = vpop.xlane.xlu0 %160
  %v162 = vsel %vm43, %v132, 0.0
  %163 = vadd.xlane.f32.xlu0 %v162
  %v164 = vpop.xlane.xlu0 %163
  %v165 = vsel %vm43, %v133, 0.0
  %166 = vadd.xlane.f32.xlu0 %v165
  %v167 = vpop.xlane.xlu0 %166
  %v168 = vsel %vm43, %v134, 0.0
  %169 = vadd.xlane.f32.xlu0 %v168
  %v170 = vpop.xlane.xlu0 %169
  %v171 = vsel %vm43, %v135, 0.0
  %172 = vadd.xlane.f32.xlu0 %v171
  %v173 = vpop.xlane.xlu0 %172
  %v174 = vsel %vm43, %v136, 0.0
  %175 = vadd.xlane.f32.xlu0 %v174
  %v176 = vpop.xlane.xlu0 %175
  %v177 = vsel %vm43, %v137, 0.0
  %178 = vadd.xlane.f32.xlu0 %v177
  %v179 = vpop.xlane.xlu0 %178
  %v180 = vsel %vm43, %v138, 0.0
  %181 = vadd.xlane.f32.xlu0 %v180
  %v182 = vpop.xlane.xlu0 %181
  %v183 = vsel %vm43, %v139, 0.0
  %184 = vadd.xlane.f32.xlu0 %v183
  %v185 = vpop.xlane.xlu0 %184
  %v186 = vsel %vm43, %v140, 0.0
  %187 = vadd.xlane.f32.xlu0 %v186
  %v188 = vpop.xlane.xlu0 %187
  %v189 = vmul.f32 %v143, %v92
  %v190 = vmul.f32 %v146, %v92
  %v191 = vmul.f32 %v149, %v92
  %v192 = vmul.f32 %v152, %v92
  %v193 = vmul.f32 %v155, %v92
  %v194 = vmul.f32 %v158, %v92
  %v195 = vmul.f32 %v161, %v92
  %v196 = vmul.f32 %v164, %v92
  %v197 = vmul.f32 %v167, %v92
  %v198 = vmul.f32 %v170, %v92
  %v199 = vmul.f32 %v173, %v92
  %v200 = vmul.f32 %v176, %v92
  %v201 = vmul.f32 %v179, %v92
  %v202 = vmul.f32 %v182, %v92
  %v203 = vmul.f32 %v185, %v92
  %v204 = vmul.f32 %v188, %v92
  %v205 = vadd.f32 %v189, 1e-05
  %v206 = vadd.f32 %v190, 1e-05
  %v207 = vadd.f32 %v191, 1e-05
  %v208 = vadd.f32 %v192, 1e-05
  %v209 = vadd.f32 %v193, 1e-05
  %v210 = vadd.f32 %v194, 1e-05
  %v211 = vadd.f32 %v195, 1e-05
  %v212 = vadd.f32 %v196, 1e-05
  %v213 = vadd.f32 %v197, 1e-05
  %v214 = vadd.f32 %v198, 1e-05
  %v215 = vadd.f32 %v199, 1e-05
  %v216 = vadd.f32 %v200, 1e-05
  %v217 = vadd.f32 %v201, 1e-05
  %v218 = vadd.f32 %v202, 1e-05
  %v219 = vadd.f32 %v203, 1e-05
  %v220 = vadd.f32 %v204, 1e-05
  %v221 = vrsqrt.pop %v205
  %v222 = vrsqrt.pop %v206
  %v223 = vrsqrt.pop %v207
  %v224 = vrsqrt.pop %v208
  %v225 = vrsqrt.pop %v209
  %v226 = vrsqrt.pop %v210
  %v227 = vrsqrt.pop %v211
  %v228 = vrsqrt.pop %v212
  %v229 = vrsqrt.pop %v213
  %v230 = vrsqrt.pop %v214
  %v231 = vrsqrt.pop %v215
  %v232 = vrsqrt.pop %v216
  %v233 = vrsqrt.pop %v217
  %v234 = vrsqrt.pop %v218
  %v235 = vrsqrt.pop %v219
  %v236 = vrsqrt.pop %v220
  %v237 = vmul.f32 %v109, %v221
  %v238 = vmul.f32 %v110, %v222
  %v239 = vmul.f32 %v111, %v223
  %v240 = vmul.f32 %v112, %v224
  %v241 = vmul.f32 %v113, %v225
  %v242 = vmul.f32 %v114, %v226
  %v243 = vmul.f32 %v115, %v227
  %v244 = vmul.f32 %v116, %v228
  %v245 = vmul.f32 %v117, %v229
  %v246 = vmul.f32 %v118, %v230
  %v247 = vmul.f32 %v119, %v231
  %v248 = vmul.f32 %v120, %v232
  %v249 = vmul.f32 %v121, %v233
  %v250 = vmul.f32 %v122, %v234
  %v251 = vmul.f32 %v123, %v235
  %v252 = vmul.f32 %v124, %v236
  %v253 = vpack.c.bf16 %v238, %v237
  %v254 = vpack.c.bf16 %v240, %v239
  %v255 = vpack.c.bf16 %v242, %v241
  %v256 = vpack.c.bf16 %v244, %v243
  %v257 = vpack.c.bf16 %v246, %v245
  %v258 = vpack.c.bf16 %v248, %v247
  %v259 = vpack.c.bf16 %v250, %v249
  %v260 = vpack.c.bf16 %v252, %v251
  %v261 = vld [vmem:[%s1] sm:$0xf]
  %v262 = vld [vmem:[%s1 + $0x4] sm:$0xf]
  %v263 = vld [vmem:[%s1 + $0x8] sm:$0xf]
  %v264 = vld [vmem:[%s1 + $0xc] sm:$0xf]
  %v265 = vld [vmem:[%s2] sm:$0x1]
  %v267 = vlaneseq
  %v268 = vshrl.u32 %v267, 7
  %v269 = vsub.s32 0, %v268
  %v270 = vrot.slane %v265, %v269
  %v276 = vunpack.c.l.b16 %v261
  %v277 = vunpack.c.l.b16 %v262
  %v278 = vunpack.c.l.b16 %v263
  %v279 = vunpack.c.l.b16 %v264
  %v280 = vpack.c.b16 %v277, %v276
  %v281 = vpack.c.b16 %v279, %v278
  %v285 = vsel %vm43, %v253, 0
  %v288 = vsel %vm43, %v254, 0
  %v291 = vsel %vm43, %v255, 0
  %v294 = vsel %vm43, %v256, 0
  %v297 = vsel %vm43, %v257, 0
  %v300 = vsel %vm43, %v258, 0
  %v303 = vsel %vm43, %v259, 0
  %v306 = vsel %vm43, %v260, 0
  %308 = vmatprep.subr.bf16.mxu0 0
  %309 = vmatpush1.bf16.msra.mxu0 %v280
  %310 = vmatprep.subr.bf16.mxu0 0
  %311 = vmatpush1.bf16.msra.mxu0 %v281
  %312 = vmatprep.subr.bf16.mxu0 0
  %313 = vmatpush1.bf16.msra.mxu0 0
  %314 = vmatprep.subr.bf16.mxu0 0
  %315 = vmatpush1.bf16.msra.mxu0 0
  %316 = vmatprep.subr.bf16.mxu0 0
  %317 = vmatpush1.bf16.msra.mxu0 0
  %318 = vmatprep.subr.bf16.mxu0 0
  %319 = vmatpush1.bf16.msra.mxu0 0
  %320 = vmatprep.subr.bf16.mxu0 0
  %321 = vmatpush1.bf16.msra.mxu0 0
  %322 = vmatprep.subr.bf16.mxu0 0
  %323 = vmatpush1.bf16.msra.mxu0 0
  %324 = vmatprep.subr.bf16.mxu0 0
  %325 = vmatpush1.bf16.msra.mxu0 0
  %326 = vmatprep.subr.bf16.mxu0 0
  %327 = vmatpush1.bf16.msra.mxu0 0
  %328 = vmatprep.subr.bf16.mxu0 0
  %329 = vmatpush1.bf16.msra.mxu0 0
  %330 = vmatprep.subr.bf16.mxu0 0
  %331 = vmatpush1.bf16.msra.mxu0 0
  %332 = vmatprep.subr.bf16.mxu0 0
  %333 = vmatpush1.bf16.msra.mxu0 0
  %334 = vmatprep.subr.bf16.mxu0 0
  %335 = vmatpush1.bf16.msra.mxu0 0
  %336 = vmatprep.subr.bf16.mxu0 0
  %337 = vmatpush1.bf16.msra.mxu0 0
  %338 = vmatprep.subr.bf16.mxu0 0
  %339 = vmatpush1.bf16.msra.mxu0 0
  %340 = vmatprep.mubr.bf16.mxu0 0
  %341 = vmatmul.mubr.bf16.gmra.mrb[0].mxu0 %v285
  %v342 = vpop.f32.mrb[0].mxu0
  %v343 = vadd.f32 %v270, %v342
  %v344 = vpop.f32.mrb[0].mxu0
  %v345 = vpop.f32.mrb[0].mxu0
  %v346 = vadd.f32 %v270, %v345
  %v347 = vpop.f32.mrb[0].mxu0
  %348 = vmatprep.mubr.bf16.mxu0 0
  %349 = vmatmul.mubr.bf16.gmra.mrb[0].mxu0 %v288
  %v350 = vpop.f32.mrb[0].mxu0
  %v351 = vadd.f32 %v270, %v350
  %v352 = vpop.f32.mrb[0].mxu0
  %v353 = vpop.f32.mrb[0].mxu0
  %v354 = vadd.f32 %v270, %v353
  %v355 = vpop.f32.mrb[0].mxu0
  %356 = vmatprep.mubr.bf16.mxu0 0
  %357 = vmatmul.mubr.bf16.gmra.mrb[0].mxu0 %v291
  %v358 = vpop.f32.mrb[0].mxu0
  %v359 = vadd.f32 %v270, %v358
  %v360 = vpop.f32.mrb[0].mxu0
  %v361 = vpop.f32.mrb[0].mxu0
  %v362 = vadd.f32 %v270, %v361
  %v363 = vpop.f32.mrb[0].mxu0
  %364 = vmatprep.mubr.bf16.mxu0 0
  %365 = vmatmul.mubr.bf16.gmra.mrb[0].mxu0 %v294
  %v366 = vpop.f32.mrb[0].mxu0
  %v367 = vadd.f32 %v270, %v366
  %v368 = vpop.f32.mrb[0].mxu0
  %v369 = vpop.f32.mrb[0].mxu0
  %v370 = vadd.f32 %v270, %v369
  %v371 = vpop.f32.mrb[0].mxu0
  %372 = vmatprep.mubr.bf16.mxu0 0
  %373 = vmatmul.mubr.bf16.gmra.mrb[0].mxu0 %v297
  %v374 = vpop.f32.mrb[0].mxu0
  %v375 = vadd.f32 %v270, %v374
  %v376 = vpop.f32.mrb[0].mxu0
  %v377 = vpop.f32.mrb[0].mxu0
  %v378 = vadd.f32 %v270, %v377
  %v379 = vpop.f32.mrb[0].mxu0
  %380 = vmatprep.mubr.bf16.mxu0 0
  %381 = vmatmul.mubr.bf16.gmra.mrb[0].mxu0 %v300
  %v382 = vpop.f32.mrb[0].mxu0
  %v383 = vadd.f32 %v270, %v382
  %v384 = vpop.f32.mrb[0].mxu0
  %v385 = vpop.f32.mrb[0].mxu0
  %v386 = vadd.f32 %v270, %v385
  %v387 = vpop.f32.mrb[0].mxu0
  %388 = vmatprep.mubr.bf16.mxu0 0
  %389 = vmatmul.mubr.bf16.gmra.mrb[0].mxu0 %v303
  %v390 = vpop.f32.mrb[0].mxu0
  %v391 = vadd.f32 %v270, %v390
  %v392 = vpop.f32.mrb[0].mxu0
  %v393 = vpop.f32.mrb[0].mxu0
  %v394 = vadd.f32 %v270, %v393
  %v395 = vpop.f32.mrb[0].mxu0
  %396 = vmatprep.mubr.bf16.mxu0 0
  %397 = vmatmul.mubr.bf16.gmra.mrb[0].mxu0 %v306
  %v398 = vpop.f32.mrb[0].mxu0
  %v399 = vadd.f32 %v270, %v398
  %v400 = vpop.f32.mrb[0].mxu0
  %v401 = vpop.f32.mrb[0].mxu0
  %v402 = vadd.f32 %v270, %v401
  %v403 = vpop.f32.mrb[0].mxu0
  %404 = vdwg.mxu0
  %v405 = vmax.f32 %v343, 0.0
  %v406 = vmax.f32 %v346, 0.0
  %v407 = vmax.f32 %v351, 0.0
  %v408 = vmax.f32 %v354, 0.0
  %v409 = vmax.f32 %v359, 0.0
  %v410 = vmax.f32 %v362, 0.0
  %v411 = vmax.f32 %v367, 0.0
  %v412 = vmax.f32 %v370, 0.0
  %v413 = vmax.f32 %v375, 0.0
  %v414 = vmax.f32 %v378, 0.0
  %v415 = vmax.f32 %v383, 0.0
  %v416 = vmax.f32 %v386, 0.0
  %v417 = vmax.f32 %v391, 0.0
  %v418 = vmax.f32 %v394, 0.0
  %v419 = vmax.f32 %v399, 0.0
  %v420 = vmax.f32 %v402, 0.0
  %vm421 = vcmask 523264
  %v422 = vsel %vm421, %v405, 0.0
  %423 = vadd.xlane.f32.xlu0 %v422
  %v424 = vpop.xlane.xlu0 %423
  %v425 = vsel %vm421, %v406, 0.0
  %426 = vadd.xlane.f32.xlu0 %v425
  %v427 = vpop.xlane.xlu0 %426
  %v428 = vsel %vm421, %v407, 0.0
  %429 = vadd.xlane.f32.xlu0 %v428
  %v430 = vpop.xlane.xlu0 %429
  %v431 = vsel %vm421, %v408, 0.0
  %432 = vadd.xlane.f32.xlu0 %v431
  %v433 = vpop.xlane.xlu0 %432
  %v434 = vsel %vm421, %v409, 0.0
  %435 = vadd.xlane.f32.xlu0 %v434
  %v436 = vpop.xlane.xlu0 %435
  %v437 = vsel %vm421, %v410, 0.0
  %438 = vadd.xlane.f32.xlu0 %v437
  %v439 = vpop.xlane.xlu0 %438
  %v440 = vsel %vm421, %v411, 0.0
  %441 = vadd.xlane.f32.xlu0 %v440
  %v442 = vpop.xlane.xlu0 %441
  %v443 = vsel %vm421, %v412, 0.0
  %444 = vadd.xlane.f32.xlu0 %v443
  %v445 = vpop.xlane.xlu0 %444
  %v446 = vsel %vm421, %v413, 0.0
  %447 = vadd.xlane.f32.xlu0 %v446
  %v448 = vpop.xlane.xlu0 %447
  %v449 = vsel %vm421, %v414, 0.0
  %450 = vadd.xlane.f32.xlu0 %v449
  %v451 = vpop.xlane.xlu0 %450
  %v452 = vsel %vm421, %v415, 0.0
  %453 = vadd.xlane.f32.xlu0 %v452
  %v454 = vpop.xlane.xlu0 %453
  %v455 = vsel %vm421, %v416, 0.0
  %456 = vadd.xlane.f32.xlu0 %v455
  %v457 = vpop.xlane.xlu0 %456
  %v458 = vsel %vm421, %v417, 0.0
  %459 = vadd.xlane.f32.xlu0 %v458
  %v460 = vpop.xlane.xlu0 %459
  %v461 = vsel %vm421, %v418, 0.0
  %462 = vadd.xlane.f32.xlu0 %v461
  %v463 = vpop.xlane.xlu0 %462
  %v464 = vsel %vm421, %v419, 0.0
  %465 = vadd.xlane.f32.xlu0 %v464
  %v466 = vpop.xlane.xlu0 %465
  %v467 = vsel %vm421, %v420, 0.0
  %468 = vadd.xlane.f32.xlu0 %v467
  %v469 = vpop.xlane.xlu0 %468
  %v470 = vrcp.pop 64.0
  %v471 = vmul.f32 %v424, %v470
  %v472 = vmul.f32 %v427, %v470
  %v473 = vmul.f32 %v430, %v470
  %v474 = vmul.f32 %v433, %v470
  %v475 = vmul.f32 %v436, %v470
  %v476 = vmul.f32 %v439, %v470
  %v477 = vmul.f32 %v442, %v470
  %v478 = vmul.f32 %v445, %v470
  %v479 = vmul.f32 %v448, %v470
  %v480 = vmul.f32 %v451, %v470
  %v481 = vmul.f32 %v454, %v470
  %v482 = vmul.f32 %v457, %v470
  %v483 = vmul.f32 %v460, %v470
  %v484 = vmul.f32 %v463, %v470
  %v485 = vmul.f32 %v466, %v470
  %v486 = vmul.f32 %v469, %v470
  %v487 = vsub.f32 %v405, %v471
  %v488 = vsub.f32 %v406, %v472
  %v489 = vsub.f32 %v407, %v473
  %v490 = vsub.f32 %v408, %v474
  %v491 = vsub.f32 %v409, %v475
  %v492 = vsub.f32 %v410, %v476
  %v493 = vsub.f32 %v411, %v477
  %v494 = vsub.f32 %v412, %v478
  %v495 = vsub.f32 %v413, %v479
  %v496 = vsub.f32 %v414, %v480
  %v497 = vsub.f32 %v415, %v481
  %v498 = vsub.f32 %v416, %v482
  %v499 = vsub.f32 %v417, %v483
  %v500 = vsub.f32 %v418, %v484
  %v501 = vsub.f32 %v419, %v485
  %v502 = vsub.f32 %v420, %v486
  %v503 = vmul.f32 %v487, %v487
  %v504 = vmul.f32 %v488, %v488
  %v505 = vmul.f32 %v489, %v489
  %v506 = vmul.f32 %v490, %v490
  %v507 = vmul.f32 %v491, %v491
  %v508 = vmul.f32 %v492, %v492
  %v509 = vmul.f32 %v493, %v493
  %v510 = vmul.f32 %v494, %v494
  %v511 = vmul.f32 %v495, %v495
  %v512 = vmul.f32 %v496, %v496
  %v513 = vmul.f32 %v497, %v497
  %v514 = vmul.f32 %v498, %v498
  %v515 = vmul.f32 %v499, %v499
  %v516 = vmul.f32 %v500, %v500
  %v517 = vmul.f32 %v501, %v501
  %v518 = vmul.f32 %v502, %v502
  %v519 = vsel %vm421, %v503, 0.0
  %520 = vadd.xlane.f32.xlu0 %v519
  %v521 = vpop.xlane.xlu0 %520
  %v522 = vsel %vm421, %v504, 0.0
  %523 = vadd.xlane.f32.xlu0 %v522
  %v524 = vpop.xlane.xlu0 %523
  %v525 = vsel %vm421, %v505, 0.0
  %526 = vadd.xlane.f32.xlu0 %v525
  %v527 = vpop.xlane.xlu0 %526
  %v528 = vsel %vm421, %v506, 0.0
  %529 = vadd.xlane.f32.xlu0 %v528
  %v530 = vpop.xlane.xlu0 %529
  %v531 = vsel %vm421, %v507, 0.0
  %532 = vadd.xlane.f32.xlu0 %v531
  %v533 = vpop.xlane.xlu0 %532
  %v534 = vsel %vm421, %v508, 0.0
  %535 = vadd.xlane.f32.xlu0 %v534
  %v536 = vpop.xlane.xlu0 %535
  %v537 = vsel %vm421, %v509, 0.0
  %538 = vadd.xlane.f32.xlu0 %v537
  %v539 = vpop.xlane.xlu0 %538
  %v540 = vsel %vm421, %v510, 0.0
  %541 = vadd.xlane.f32.xlu0 %v540
  %v542 = vpop.xlane.xlu0 %541
  %v543 = vsel %vm421, %v511, 0.0
  %544 = vadd.xlane.f32.xlu0 %v543
  %v545 = vpop.xlane.xlu0 %544
  %v546 = vsel %vm421, %v512, 0.0
  %547 = vadd.xlane.f32.xlu0 %v546
  %v548 = vpop.xlane.xlu0 %547
  %v549 = vsel %vm421, %v513, 0.0
  %550 = vadd.xlane.f32.xlu0 %v549
  %v551 = vpop.xlane.xlu0 %550
  %v552 = vsel %vm421, %v514, 0.0
  %553 = vadd.xlane.f32.xlu0 %v552
  %v554 = vpop.xlane.xlu0 %553
  %v555 = vsel %vm421, %v515, 0.0
  %556 = vadd.xlane.f32.xlu0 %v555
  %v557 = vpop.xlane.xlu0 %556
  %v558 = vsel %vm421, %v516, 0.0
  %559 = vadd.xlane.f32.xlu0 %v558
  %v560 = vpop.xlane.xlu0 %559
  %v561 = vsel %vm421, %v517, 0.0
  %562 = vadd.xlane.f32.xlu0 %v561
  %v563 = vpop.xlane.xlu0 %562
  %v564 = vsel %vm421, %v518, 0.0
  %565 = vadd.xlane.f32.xlu0 %v564
  %v566 = vpop.xlane.xlu0 %565
  %v567 = vmul.f32 %v521, %v470
  %v568 = vmul.f32 %v524, %v470
  %v569 = vmul.f32 %v527, %v470
  %v570 = vmul.f32 %v530, %v470
  %v571 = vmul.f32 %v533, %v470
  %v572 = vmul.f32 %v536, %v470
  %v573 = vmul.f32 %v539, %v470
  %v574 = vmul.f32 %v542, %v470
  %v575 = vmul.f32 %v545, %v470
  %v576 = vmul.f32 %v548, %v470
  %v577 = vmul.f32 %v551, %v470
  %v578 = vmul.f32 %v554, %v470
  %v579 = vmul.f32 %v557, %v470
  %v580 = vmul.f32 %v560, %v470
  %v581 = vmul.f32 %v563, %v470
  %v582 = vmul.f32 %v566, %v470
  %v583 = vadd.f32 %v567, 1e-05
  %v584 = vadd.f32 %v568, 1e-05
  %v585 = vadd.f32 %v569, 1e-05
  %v586 = vadd.f32 %v570, 1e-05
  %v587 = vadd.f32 %v571, 1e-05
  %v588 = vadd.f32 %v572, 1e-05
  %v589 = vadd.f32 %v573, 1e-05
  %v590 = vadd.f32 %v574, 1e-05
  %v591 = vadd.f32 %v575, 1e-05
  %v592 = vadd.f32 %v576, 1e-05
  %v593 = vadd.f32 %v577, 1e-05
  %v594 = vadd.f32 %v578, 1e-05
  %v595 = vadd.f32 %v579, 1e-05
  %v596 = vadd.f32 %v580, 1e-05
  %v597 = vadd.f32 %v581, 1e-05
  %v598 = vadd.f32 %v582, 1e-05
  %v599 = vrsqrt.pop %v583
  %v600 = vrsqrt.pop %v584
  %v601 = vrsqrt.pop %v585
  %v602 = vrsqrt.pop %v586
  %v603 = vrsqrt.pop %v587
  %v604 = vrsqrt.pop %v588
  %v605 = vrsqrt.pop %v589
  %v606 = vrsqrt.pop %v590
  %v607 = vrsqrt.pop %v591
  %v608 = vrsqrt.pop %v592
  %v609 = vrsqrt.pop %v593
  %v610 = vrsqrt.pop %v594
  %v611 = vrsqrt.pop %v595
  %v612 = vrsqrt.pop %v596
  %v613 = vrsqrt.pop %v597
  %v614 = vrsqrt.pop %v598
  %v615 = vmul.f32 %v487, %v599
  %v616 = vmul.f32 %v488, %v600
  %v617 = vmul.f32 %v489, %v601
  %v618 = vmul.f32 %v490, %v602
  %v619 = vmul.f32 %v491, %v603
  %v620 = vmul.f32 %v492, %v604
  %v621 = vmul.f32 %v493, %v605
  %v622 = vmul.f32 %v494, %v606
  %v623 = vmul.f32 %v495, %v607
  %v624 = vmul.f32 %v496, %v608
  %v625 = vmul.f32 %v497, %v609
  %v626 = vmul.f32 %v498, %v610
  %v627 = vmul.f32 %v499, %v611
  %v628 = vmul.f32 %v500, %v612
  %v629 = vmul.f32 %v501, %v613
  %v630 = vmul.f32 %v502, %v614
  %v631 = vpack.c.bf16 %v616, %v615
  %v632 = vpack.c.bf16 %v618, %v617
  %v633 = vpack.c.bf16 %v620, %v619
  %v634 = vpack.c.bf16 %v622, %v621
  %v635 = vpack.c.bf16 %v624, %v623
  %v636 = vpack.c.bf16 %v626, %v625
  %v637 = vpack.c.bf16 %v628, %v627
  %v638 = vpack.c.bf16 %v630, %v629
  %v639 = vld [vmem:[%s3] sm:$0xf]
  %v640 = vld [vmem:[%s3 + $0x4] sm:$0xf]
  %v641 = vld [vmem:[%s3 + $0x8] sm:$0xf]
  %v642 = vld [vmem:[%s3 + $0xc] sm:$0xf]
  %v643 = vld [vmem:[%s3 + $0x10] sm:$0xf]
  %v644 = vld [vmem:[%s3 + $0x14] sm:$0xf]
  %v645 = vld [vmem:[%s3 + $0x18] sm:$0xf]
  %v646 = vld [vmem:[%s3 + $0x1c] sm:$0xf]
  %v647 = vld [vmem:[%s4] sm:$0x1]
  %v649 = vlaneseq
  %v650 = vshrl.u32 %v649, 7
  %v651 = vsub.s32 0, %v650
  %v652 = vrot.slane %v647, %v651
  %v662 = vunpack.c.l.b16 %v639
  %v663 = vunpack.c.l.b16 %v640
  %v664 = vunpack.c.l.b16 %v641
  %v665 = vunpack.c.l.b16 %v642
  %v666 = vunpack.c.l.b16 %v643
  %v667 = vunpack.c.l.b16 %v644
  %v668 = vunpack.c.l.b16 %v645
  %v669 = vunpack.c.l.b16 %v646
  %v670 = vpack.c.b16 %v663, %v662
  %v671 = vpack.c.b16 %v665, %v664
  %v672 = vpack.c.b16 %v667, %v666
  %v673 = vpack.c.b16 %v669, %v668
  %v679 = vsel %vm421, %v631, 0
  %v682 = vsel %vm421, %v632, 0
  %v685 = vsel %vm421, %v633, 0
  %v688 = vsel %vm421, %v634, 0
  %v691 = vsel %vm421, %v635, 0
  %v694 = vsel %vm421, %v636, 0
  %v697 = vsel %vm421, %v637, 0
  %v700 = vsel %vm421, %v638, 0
  %702 = vmatprep.subr.bf16.mxu0 0
  %703 = vmatpush1.bf16.msra.mxu0 %v670
  %704 = vmatprep.subr.bf16.mxu0 0
  %705 = vmatpush1.bf16.msra.mxu0 %v671
  %706 = vmatprep.subr.bf16.mxu0 0
  %707 = vmatpush1.bf16.msra.mxu0 %v672
  %708 = vmatprep.subr.bf16.mxu0 0
  %709 = vmatpush1.bf16.msra.mxu0 %v673
  %710 = vmatprep.subr.bf16.mxu0 0
  %711 = vmatpush1.bf16.msra.mxu0 0
  %712 = vmatprep.subr.bf16.mxu0 0
  %713 = vmatpush1.bf16.msra.mxu0 0
  %714 = vmatprep.subr.bf16.mxu0 0
  %715 = vmatpush1.bf16.msra.mxu0 0
  %716 = vmatprep.subr.bf16.mxu0 0
  %717 = vmatpush1.bf16.msra.mxu0 0
  %718 = vmatprep.subr.bf16.mxu0 0
  %719 = vmatpush1.bf16.msra.mxu0 0
  %720 = vmatprep.subr.bf16.mxu0 0
  %721 = vmatpush1.bf16.msra.mxu0 0
  %722 = vmatprep.subr.bf16.mxu0 0
  %723 = vmatpush1.bf16.msra.mxu0 0
  %724 = vmatprep.subr.bf16.mxu0 0
  %725 = vmatpush1.bf16.msra.mxu0 0
  %726 = vmatprep.subr.bf16.mxu0 0
  %727 = vmatpush1.bf16.msra.mxu0 0
  %728 = vmatprep.subr.bf16.mxu0 0
  %729 = vmatpush1.bf16.msra.mxu0 0
  %730 = vmatprep.subr.bf16.mxu0 0
  %731 = vmatpush1.bf16.msra.mxu0 0
  %732 = vmatprep.subr.bf16.mxu0 0
  %733 = vmatpush1.bf16.msra.mxu0 0
  %734 = vmatprep.mubr.bf16.mxu0 0
  %735 = vmatmul.mubr.bf16.gmra.mrb[0].mxu0 %v679
  %v736 = vpop.f32.mrb[0].mxu0
  %v737 = vadd.f32 %v652, %v736
  %v738 = vpop.f32.mrb[0].mxu0
  %v739 = vpop.f32.mrb[0].mxu0
  %v740 = vadd.f32 %v652, %v739
  %v741 = vpop.f32.mrb[0].mxu0
  %742 = vmatprep.mubr.bf16.mxu0 0
  %743 = vmatmul.mubr.bf16.gmra.mrb[0].mxu0 %v682
  %v744 = vpop.f32.mrb[0].mxu0
  %v745 = vadd.f32 %v652, %v744
  %v746 = vpop.f32.mrb[0].mxu0
  %v747 = vpop.f32.mrb[0].mxu0
  %v748 = vadd.f32 %v652, %v747
  %v749 = vpop.f32.mrb[0].mxu0
  %750 = vmatprep.mubr.bf16.mxu0 0
  %751 = vmatmul.mubr.bf16.gmra.mrb[0].mxu0 %v685
  %v752 = vpop.f32.mrb[0].mxu0
  %v753 = vadd.f32 %v652, %v752
  %v754 = vpop.f32.mrb[0].mxu0
  %v755 = vpop.f32.mrb[0].mxu0
  %v756 = vadd.f32 %v652, %v755
  %v757 = vpop.f32.mrb[0].mxu0
  %758 = vmatprep.mubr.bf16.mxu0 0
  %759 = vmatmul.mubr.bf16.gmra.mrb[0].mxu0 %v688
  %v760 = vpop.f32.mrb[0].mxu0
  %v761 = vadd.f32 %v652, %v760
  %v762 = vpop.f32.mrb[0].mxu0
  %v763 = vpop.f32.mrb[0].mxu0
  %v764 = vadd.f32 %v652, %v763
  %v765 = vpop.f32.mrb[0].mxu0
  %766 = vmatprep.mubr.bf16.mxu0 0
  %767 = vmatmul.mubr.bf16.gmra.mrb[0].mxu0 %v691
  %v768 = vpop.f32.mrb[0].mxu0
  %v769 = vadd.f32 %v652, %v768
  %v770 = vpop.f32.mrb[0].mxu0
  %v771 = vpop.f32.mrb[0].mxu0
  %v772 = vadd.f32 %v652, %v771
  %v773 = vpop.f32.mrb[0].mxu0
  %774 = vmatprep.mubr.bf16.mxu0 0
  %775 = vmatmul.mubr.bf16.gmra.mrb[0].mxu0 %v694
  %v776 = vpop.f32.mrb[0].mxu0
  %v777 = vadd.f32 %v652, %v776
  %v778 = vpop.f32.mrb[0].mxu0
  %v779 = vpop.f32.mrb[0].mxu0
  %v780 = vadd.f32 %v652, %v779
  %v781 = vpop.f32.mrb[0].mxu0
  %782 = vmatprep.mubr.bf16.mxu0 0
  %783 = vmatmul.mubr.bf16.gmra.mrb[0].mxu0 %v697
  %v784 = vpop.f32.mrb[0].mxu0
  %v785 = vadd.f32 %v652, %v784
  %v786 = vpop.f32.mrb[0].mxu0
  %v787 = vpop.f32.mrb[0].mxu0
  %v788 = vadd.f32 %v652, %v787
  %v789 = vpop.f32.mrb[0].mxu0
  %790 = vmatprep.mubr.bf16.mxu0 0
  %791 = vmatmul.mubr.bf16.gmra.mrb[0].mxu0 %v700
  %v792 = vpop.f32.mrb[0].mxu0
  %v793 = vadd.f32 %v652, %v792
  %v794 = vpop.f32.mrb[0].mxu0
  %v795 = vpop.f32.mrb[0].mxu0
  %v796 = vadd.f32 %v652, %v795
  %v797 = vpop.f32.mrb[0].mxu0
  %798 = vdwg.mxu0
  %v799 = vmax.f32 %v737, 0.0
  %v800 = vmax.f32 %v740, 0.0
  %v801 = vmax.f32 %v745, 0.0
  %v802 = vmax.f32 %v748, 0.0
  %v803 = vmax.f32 %v753, 0.0
  %v804 = vmax.f32 %v756, 0.0
  %v805 = vmax.f32 %v761, 0.0
  %v806 = vmax.f32 %v764, 0.0
  %v807 = vmax.f32 %v769, 0.0
  %v808 = vmax.f32 %v772, 0.0
  %v809 = vmax.f32 %v777, 0.0
  %v810 = vmax.f32 %v780, 0.0
  %v811 = vmax.f32 %v785, 0.0
  %v812 = vmax.f32 %v788, 0.0
  %v813 = vmax.f32 %v793, 0.0
  %v814 = vmax.f32 %v796, 0.0
  %v815 = vsel %vm421, %v799, 0.0
  %816 = vadd.xlane.f32.xlu0 %v815
  %v817 = vpop.xlane.xlu0 %816
  %v818 = vsel %vm421, %v800, 0.0
  %819 = vadd.xlane.f32.xlu0 %v818
  %v820 = vpop.xlane.xlu0 %819
  %v821 = vsel %vm421, %v801, 0.0
  %822 = vadd.xlane.f32.xlu0 %v821
  %v823 = vpop.xlane.xlu0 %822
  %v824 = vsel %vm421, %v802, 0.0
  %825 = vadd.xlane.f32.xlu0 %v824
  %v826 = vpop.xlane.xlu0 %825
  %v827 = vsel %vm421, %v803, 0.0
  %828 = vadd.xlane.f32.xlu0 %v827
  %v829 = vpop.xlane.xlu0 %828
  %v830 = vsel %vm421, %v804, 0.0
  %831 = vadd.xlane.f32.xlu0 %v830
  %v832 = vpop.xlane.xlu0 %831
  %v833 = vsel %vm421, %v805, 0.0
  %834 = vadd.xlane.f32.xlu0 %v833
  %v835 = vpop.xlane.xlu0 %834
  %v836 = vsel %vm421, %v806, 0.0
  %837 = vadd.xlane.f32.xlu0 %v836
  %v838 = vpop.xlane.xlu0 %837
  %v839 = vsel %vm421, %v807, 0.0
  %840 = vadd.xlane.f32.xlu0 %v839
  %v841 = vpop.xlane.xlu0 %840
  %v842 = vsel %vm421, %v808, 0.0
  %843 = vadd.xlane.f32.xlu0 %v842
  %v844 = vpop.xlane.xlu0 %843
  %v845 = vsel %vm421, %v809, 0.0
  %846 = vadd.xlane.f32.xlu0 %v845
  %v847 = vpop.xlane.xlu0 %846
  %v848 = vsel %vm421, %v810, 0.0
  %849 = vadd.xlane.f32.xlu0 %v848
  %v850 = vpop.xlane.xlu0 %849
  %v851 = vsel %vm421, %v811, 0.0
  %852 = vadd.xlane.f32.xlu0 %v851
  %v853 = vpop.xlane.xlu0 %852
  %v854 = vsel %vm421, %v812, 0.0
  %855 = vadd.xlane.f32.xlu0 %v854
  %v856 = vpop.xlane.xlu0 %855
  %v857 = vsel %vm421, %v813, 0.0
  %858 = vadd.xlane.f32.xlu0 %v857
  %v859 = vpop.xlane.xlu0 %858
  %v860 = vsel %vm421, %v814, 0.0
  %861 = vadd.xlane.f32.xlu0 %v860
  %v862 = vpop.xlane.xlu0 %861
  %v863 = vmul.f32 %v817, %v470
  %v864 = vmul.f32 %v820, %v470
  %v865 = vmul.f32 %v823, %v470
  %v866 = vmul.f32 %v826, %v470
  %v867 = vmul.f32 %v829, %v470
  %v868 = vmul.f32 %v832, %v470
  %v869 = vmul.f32 %v835, %v470
  %v870 = vmul.f32 %v838, %v470
  %v871 = vmul.f32 %v841, %v470
  %v872 = vmul.f32 %v844, %v470
  %v873 = vmul.f32 %v847, %v470
  %v874 = vmul.f32 %v850, %v470
  %v875 = vmul.f32 %v853, %v470
  %v876 = vmul.f32 %v856, %v470
  %v877 = vmul.f32 %v859, %v470
  %v878 = vmul.f32 %v862, %v470
  %v879 = vsub.f32 %v799, %v863
  %v880 = vsub.f32 %v800, %v864
  %v881 = vsub.f32 %v801, %v865
  %v882 = vsub.f32 %v802, %v866
  %v883 = vsub.f32 %v803, %v867
  %v884 = vsub.f32 %v804, %v868
  %v885 = vsub.f32 %v805, %v869
  %v886 = vsub.f32 %v806, %v870
  %v887 = vsub.f32 %v807, %v871
  %v888 = vsub.f32 %v808, %v872
  %v889 = vsub.f32 %v809, %v873
  %v890 = vsub.f32 %v810, %v874
  %v891 = vsub.f32 %v811, %v875
  %v892 = vsub.f32 %v812, %v876
  %v893 = vsub.f32 %v813, %v877
  %v894 = vsub.f32 %v814, %v878
  %v895 = vmul.f32 %v879, %v879
  %v896 = vmul.f32 %v880, %v880
  %v897 = vmul.f32 %v881, %v881
  %v898 = vmul.f32 %v882, %v882
  %v899 = vmul.f32 %v883, %v883
  %v900 = vmul.f32 %v884, %v884
  %v901 = vmul.f32 %v885, %v885
  %v902 = vmul.f32 %v886, %v886
  %v903 = vmul.f32 %v887, %v887
  %v904 = vmul.f32 %v888, %v888
  %v905 = vmul.f32 %v889, %v889
  %v906 = vmul.f32 %v890, %v890
  %v907 = vmul.f32 %v891, %v891
  %v908 = vmul.f32 %v892, %v892
  %v909 = vmul.f32 %v893, %v893
  %v910 = vmul.f32 %v894, %v894
  %v911 = vsel %vm421, %v895, 0.0
  %912 = vadd.xlane.f32.xlu0 %v911
  %v913 = vpop.xlane.xlu0 %912
  %v914 = vsel %vm421, %v896, 0.0
  %915 = vadd.xlane.f32.xlu0 %v914
  %v916 = vpop.xlane.xlu0 %915
  %v917 = vsel %vm421, %v897, 0.0
  %918 = vadd.xlane.f32.xlu0 %v917
  %v919 = vpop.xlane.xlu0 %918
  %v920 = vsel %vm421, %v898, 0.0
  %921 = vadd.xlane.f32.xlu0 %v920
  %v922 = vpop.xlane.xlu0 %921
  %v923 = vsel %vm421, %v899, 0.0
  %924 = vadd.xlane.f32.xlu0 %v923
  %v925 = vpop.xlane.xlu0 %924
  %v926 = vsel %vm421, %v900, 0.0
  %927 = vadd.xlane.f32.xlu0 %v926
  %v928 = vpop.xlane.xlu0 %927
  %v929 = vsel %vm421, %v901, 0.0
  %930 = vadd.xlane.f32.xlu0 %v929
  %v931 = vpop.xlane.xlu0 %930
  %v932 = vsel %vm421, %v902, 0.0
  %933 = vadd.xlane.f32.xlu0 %v932
  %v934 = vpop.xlane.xlu0 %933
  %v935 = vsel %vm421, %v903, 0.0
  %936 = vadd.xlane.f32.xlu0 %v935
  %v937 = vpop.xlane.xlu0 %936
  %v938 = vsel %vm421, %v904, 0.0
  %939 = vadd.xlane.f32.xlu0 %v938
  %v940 = vpop.xlane.xlu0 %939
  %v941 = vsel %vm421, %v905, 0.0
  %942 = vadd.xlane.f32.xlu0 %v941
  %v943 = vpop.xlane.xlu0 %942
  %v944 = vsel %vm421, %v906, 0.0
  %945 = vadd.xlane.f32.xlu0 %v944
  %v946 = vpop.xlane.xlu0 %945
  %v947 = vsel %vm421, %v907, 0.0
  %948 = vadd.xlane.f32.xlu0 %v947
  %v949 = vpop.xlane.xlu0 %948
  %v950 = vsel %vm421, %v908, 0.0
  %951 = vadd.xlane.f32.xlu0 %v950
  %v952 = vpop.xlane.xlu0 %951
  %v953 = vsel %vm421, %v909, 0.0
  %954 = vadd.xlane.f32.xlu0 %v953
  %v955 = vpop.xlane.xlu0 %954
  %v956 = vsel %vm421, %v910, 0.0
  %957 = vadd.xlane.f32.xlu0 %v956
  %v958 = vpop.xlane.xlu0 %957
  %v959 = vmul.f32 %v913, %v470
  %v960 = vmul.f32 %v916, %v470
  %v961 = vmul.f32 %v919, %v470
  %v962 = vmul.f32 %v922, %v470
  %v963 = vmul.f32 %v925, %v470
  %v964 = vmul.f32 %v928, %v470
  %v965 = vmul.f32 %v931, %v470
  %v966 = vmul.f32 %v934, %v470
  %v967 = vmul.f32 %v937, %v470
  %v968 = vmul.f32 %v940, %v470
  %v969 = vmul.f32 %v943, %v470
  %v970 = vmul.f32 %v946, %v470
  %v971 = vmul.f32 %v949, %v470
  %v972 = vmul.f32 %v952, %v470
  %v973 = vmul.f32 %v955, %v470
  %v974 = vmul.f32 %v958, %v470
  %v975 = vadd.f32 %v959, 1e-05
  %v976 = vadd.f32 %v960, 1e-05
  %v977 = vadd.f32 %v961, 1e-05
  %v978 = vadd.f32 %v962, 1e-05
  %v979 = vadd.f32 %v963, 1e-05
  %v980 = vadd.f32 %v964, 1e-05
  %v981 = vadd.f32 %v965, 1e-05
  %v982 = vadd.f32 %v966, 1e-05
  %v983 = vadd.f32 %v967, 1e-05
  %v984 = vadd.f32 %v968, 1e-05
  %v985 = vadd.f32 %v969, 1e-05
  %v986 = vadd.f32 %v970, 1e-05
  %v987 = vadd.f32 %v971, 1e-05
  %v988 = vadd.f32 %v972, 1e-05
  %v989 = vadd.f32 %v973, 1e-05
  %v990 = vadd.f32 %v974, 1e-05
  %v991 = vrsqrt.pop %v975
  %v992 = vrsqrt.pop %v976
  %v993 = vrsqrt.pop %v977
  %v994 = vrsqrt.pop %v978
  %v995 = vrsqrt.pop %v979
  %v996 = vrsqrt.pop %v980
  %v997 = vrsqrt.pop %v981
  %v998 = vrsqrt.pop %v982
  %v999 = vrsqrt.pop %v983
  %v1000 = vrsqrt.pop %v984
  %v1001 = vrsqrt.pop %v985
  %v1002 = vrsqrt.pop %v986
  %v1003 = vrsqrt.pop %v987
  %v1004 = vrsqrt.pop %v988
  %v1005 = vrsqrt.pop %v989
  %v1006 = vrsqrt.pop %v990
  %v1007 = vmul.f32 %v879, %v991
  %v1008 = vmul.f32 %v880, %v992
  %v1009 = vmul.f32 %v881, %v993
  %v1010 = vmul.f32 %v882, %v994
  %v1011 = vmul.f32 %v883, %v995
  %v1012 = vmul.f32 %v884, %v996
  %v1013 = vmul.f32 %v885, %v997
  %v1014 = vmul.f32 %v886, %v998
  %v1015 = vmul.f32 %v887, %v999
  %v1016 = vmul.f32 %v888, %v1000
  %v1017 = vmul.f32 %v889, %v1001
  %v1018 = vmul.f32 %v890, %v1002
  %v1019 = vmul.f32 %v891, %v1003
  %v1020 = vmul.f32 %v892, %v1004
  %v1021 = vmul.f32 %v893, %v1005
  %v1022 = vmul.f32 %v894, %v1006
  %v1023 = vpack.c.bf16 %v1008, %v1007
  %v1024 = vpack.c.bf16 %v1010, %v1009
  %v1025 = vpack.c.bf16 %v1012, %v1011
  %v1026 = vpack.c.bf16 %v1014, %v1013
  %v1027 = vpack.c.bf16 %v1016, %v1015
  %v1028 = vpack.c.bf16 %v1018, %v1017
  %v1029 = vpack.c.bf16 %v1020, %v1019
  %v1030 = vpack.c.bf16 %v1022, %v1021
  %v1031 = vld [vmem:[%s5] sm:$0xf]
  %v1032 = vld [vmem:[%s5 + $0x4] sm:$0xf]
  %v1033 = vld [vmem:[%s5 + $0x8] sm:$0xf]
  %v1034 = vld [vmem:[%s5 + $0xc] sm:$0xf]
  %v1035 = vld [vmem:[%s5 + $0x10] sm:$0xf]
  %v1036 = vld [vmem:[%s5 + $0x14] sm:$0xf]
  %v1037 = vld [vmem:[%s5 + $0x18] sm:$0xf]
  %v1038 = vld [vmem:[%s5 + $0x1c] sm:$0xf]
  %v1039 = vld [vmem:[%s6] sm:$0x1]
  %v1041 = vlaneseq
  %v1042 = vshrl.u32 %v1041, 7
  %v1043 = vsub.s32 0, %v1042
  %v1044 = vrot.slane %v1039, %v1043
  %v1054 = vunpack.c.l.b16 %v1031
  %v1055 = vunpack.c.l.b16 %v1032
  %v1056 = vunpack.c.l.b16 %v1033
  %v1057 = vunpack.c.l.b16 %v1034
  %v1058 = vunpack.c.l.b16 %v1035
  %v1059 = vunpack.c.l.b16 %v1036
  %v1060 = vunpack.c.l.b16 %v1037
  %v1061 = vunpack.c.l.b16 %v1038
  %v1062 = vpack.c.b16 %v1055, %v1054
  %v1063 = vpack.c.b16 %v1057, %v1056
  %v1064 = vpack.c.b16 %v1059, %v1058
  %v1065 = vpack.c.b16 %v1061, %v1060
  %v1071 = vsel %vm421, %v1023, 0
  %v1074 = vsel %vm421, %v1024, 0
  %v1077 = vsel %vm421, %v1025, 0
  %v1080 = vsel %vm421, %v1026, 0
  %v1083 = vsel %vm421, %v1027, 0
  %v1086 = vsel %vm421, %v1028, 0
  %v1089 = vsel %vm421, %v1029, 0
  %v1092 = vsel %vm421, %v1030, 0
  %1094 = vmatprep.subr.bf16.mxu0 0
  %1095 = vmatpush1.bf16.msra.mxu0 %v1062
  %1096 = vmatprep.subr.bf16.mxu0 0
  %1097 = vmatpush1.bf16.msra.mxu0 %v1063
  %1098 = vmatprep.subr.bf16.mxu0 0
  %1099 = vmatpush1.bf16.msra.mxu0 %v1064
  %1100 = vmatprep.subr.bf16.mxu0 0
  %1101 = vmatpush1.bf16.msra.mxu0 %v1065
  %1102 = vmatprep.subr.bf16.mxu0 0
  %1103 = vmatpush1.bf16.msra.mxu0 0
  %1104 = vmatprep.subr.bf16.mxu0 0
  %1105 = vmatpush1.bf16.msra.mxu0 0
  %1106 = vmatprep.subr.bf16.mxu0 0
  %1107 = vmatpush1.bf16.msra.mxu0 0
  %1108 = vmatprep.subr.bf16.mxu0 0
  %1109 = vmatpush1.bf16.msra.mxu0 0
  %1110 = vmatprep.subr.bf16.mxu0 0
  %1111 = vmatpush1.bf16.msra.mxu0 0
  %1112 = vmatprep.subr.bf16.mxu0 0
  %1113 = vmatpush1.bf16.msra.mxu0 0
  %1114 = vmatprep.subr.bf16.mxu0 0
  %1115 = vmatpush1.bf16.msra.mxu0 0
  %1116 = vmatprep.subr.bf16.mxu0 0
  %1117 = vmatpush1.bf16.msra.mxu0 0
  %1118 = vmatprep.subr.bf16.mxu0 0
  %1119 = vmatpush1.bf16.msra.mxu0 0
  %1120 = vmatprep.subr.bf16.mxu0 0
  %1121 = vmatpush1.bf16.msra.mxu0 0
  %1122 = vmatprep.subr.bf16.mxu0 0
  %1123 = vmatpush1.bf16.msra.mxu0 0
  %1124 = vmatprep.subr.bf16.mxu0 0
  %1125 = vmatpush1.bf16.msra.mxu0 0
  %1126 = vmatprep.mubr.bf16.mxu0 0
  %1127 = vmatmul.mubr.bf16.gmra.mrb[0].mxu0 %v1071
  %v1128 = vpop.f32.mrb[0].mxu0
  %v1129 = vadd.f32 %v1044, %v1128
  %v1130 = vpop.f32.mrb[0].mxu0
  %v1131 = vpop.f32.mrb[0].mxu0
  %v1132 = vadd.f32 %v1044, %v1131
  %v1133 = vpop.f32.mrb[0].mxu0
  %1134 = vmatprep.mubr.bf16.mxu0 0
  %1135 = vmatmul.mubr.bf16.gmra.mrb[0].mxu0 %v1074
  %v1136 = vpop.f32.mrb[0].mxu0
  %v1137 = vadd.f32 %v1044, %v1136
  %v1138 = vpop.f32.mrb[0].mxu0
  %v1139 = vpop.f32.mrb[0].mxu0
  %v1140 = vadd.f32 %v1044, %v1139
  %v1141 = vpop.f32.mrb[0].mxu0
  %1142 = vmatprep.mubr.bf16.mxu0 0
  %1143 = vmatmul.mubr.bf16.gmra.mrb[0].mxu0 %v1077
  %v1144 = vpop.f32.mrb[0].mxu0
  %v1145 = vadd.f32 %v1044, %v1144
  %v1146 = vpop.f32.mrb[0].mxu0
  %v1147 = vpop.f32.mrb[0].mxu0
  %v1148 = vadd.f32 %v1044, %v1147
  %v1149 = vpop.f32.mrb[0].mxu0
  %1150 = vmatprep.mubr.bf16.mxu0 0
  %1151 = vmatmul.mubr.bf16.gmra.mrb[0].mxu0 %v1080
  %v1152 = vpop.f32.mrb[0].mxu0
  %v1153 = vadd.f32 %v1044, %v1152
  %v1154 = vpop.f32.mrb[0].mxu0
  %v1155 = vpop.f32.mrb[0].mxu0
  %v1156 = vadd.f32 %v1044, %v1155
  %v1157 = vpop.f32.mrb[0].mxu0
  %1158 = vmatprep.mubr.bf16.mxu0 0
  %1159 = vmatmul.mubr.bf16.gmra.mrb[0].mxu0 %v1083
  %v1160 = vpop.f32.mrb[0].mxu0
  %v1161 = vadd.f32 %v1044, %v1160
  %v1162 = vpop.f32.mrb[0].mxu0
  %v1163 = vpop.f32.mrb[0].mxu0
  %v1164 = vadd.f32 %v1044, %v1163
  %v1165 = vpop.f32.mrb[0].mxu0
  %1166 = vmatprep.mubr.bf16.mxu0 0
  %1167 = vmatmul.mubr.bf16.gmra.mrb[0].mxu0 %v1086
  %v1168 = vpop.f32.mrb[0].mxu0
  %v1169 = vadd.f32 %v1044, %v1168
  %v1170 = vpop.f32.mrb[0].mxu0
  %v1171 = vpop.f32.mrb[0].mxu0
  %v1172 = vadd.f32 %v1044, %v1171
  %v1173 = vpop.f32.mrb[0].mxu0
  %1174 = vmatprep.mubr.bf16.mxu0 0
  %1175 = vmatmul.mubr.bf16.gmra.mrb[0].mxu0 %v1089
  %v1176 = vpop.f32.mrb[0].mxu0
  %v1177 = vadd.f32 %v1044, %v1176
  %v1178 = vpop.f32.mrb[0].mxu0
  %v1179 = vpop.f32.mrb[0].mxu0
  %v1180 = vadd.f32 %v1044, %v1179
  %v1181 = vpop.f32.mrb[0].mxu0
  %1182 = vmatprep.mubr.bf16.mxu0 0
  %1183 = vmatmul.mubr.bf16.gmra.mrb[0].mxu0 %v1092
  %v1184 = vpop.f32.mrb[0].mxu0
  %v1185 = vadd.f32 %v1044, %v1184
  %v1186 = vpop.f32.mrb[0].mxu0
  %v1187 = vpop.f32.mrb[0].mxu0
  %v1188 = vadd.f32 %v1044, %v1187
  %v1189 = vpop.f32.mrb[0].mxu0
  %1190 = vdwg.mxu0
  %v1191 = vxor.u32 %v1129, 2147483648
  %v1192 = vxor.u32 %v1132, 2147483648
  %v1193 = vxor.u32 %v1137, 2147483648
  %v1194 = vxor.u32 %v1140, 2147483648
  %v1195 = vxor.u32 %v1145, 2147483648
  %v1196 = vxor.u32 %v1148, 2147483648
  %v1197 = vxor.u32 %v1153, 2147483648
  %v1198 = vxor.u32 %v1156, 2147483648
  %v1199 = vxor.u32 %v1161, 2147483648
  %v1200 = vxor.u32 %v1164, 2147483648
  %v1201 = vxor.u32 %v1169, 2147483648
  %v1202 = vxor.u32 %v1172, 2147483648
  %v1203 = vxor.u32 %v1177, 2147483648
  %v1204 = vxor.u32 %v1180, 2147483648
  %v1205 = vxor.u32 %v1185, 2147483648
  %v1206 = vxor.u32 %v1188, 2147483648
  %v1207 = vmul.f32 %v1191, 1.442695
  %v1208 = vpow.pop %v1207
  %v1209 = vmul.f32 %v1192, 1.442695
  %v1210 = vpow.pop %v1209
  %v1211 = vmul.f32 %v1193, 1.442695
  %v1212 = vpow.pop %v1211
  %v1213 = vmul.f32 %v1194, 1.442695
  %v1214 = vpow.pop %v1213
  %v1215 = vmul.f32 %v1195, 1.442695
  %v1216 = vpow.pop %v1215
  %v1217 = vmul.f32 %v1196, 1.442695
  %v1218 = vpow.pop %v1217
  %v1219 = vmul.f32 %v1197, 1.442695
  %v1220 = vpow.pop %v1219
  %v1221 = vmul.f32 %v1198, 1.442695
  %v1222 = vpow.pop %v1221
  %v1223 = vmul.f32 %v1199, 1.442695
  %v1224 = vpow.pop %v1223
  %v1225 = vmul.f32 %v1200, 1.442695
  %v1226 = vpow.pop %v1225
  %v1227 = vmul.f32 %v1201, 1.442695
  %v1228 = vpow.pop %v1227
  %v1229 = vmul.f32 %v1202, 1.442695
  %v1230 = vpow.pop %v1229
  %v1231 = vmul.f32 %v1203, 1.442695
  %v1232 = vpow.pop %v1231
  %v1233 = vmul.f32 %v1204, 1.442695
  %v1234 = vpow.pop %v1233
  %v1235 = vmul.f32 %v1205, 1.442695
  %v1236 = vpow.pop %v1235
  %v1237 = vmul.f32 %v1206, 1.442695
  %v1238 = vpow.pop %v1237
  %v1239 = vadd.f32 %v1208, 1.0
  %v1240 = vadd.f32 %v1210, 1.0
  %v1241 = vadd.f32 %v1212, 1.0
  %v1242 = vadd.f32 %v1214, 1.0
  %v1243 = vadd.f32 %v1216, 1.0
  %v1244 = vadd.f32 %v1218, 1.0
  %v1245 = vadd.f32 %v1220, 1.0
  %v1246 = vadd.f32 %v1222, 1.0
  %v1247 = vadd.f32 %v1224, 1.0
  %v1248 = vadd.f32 %v1226, 1.0
  %v1249 = vadd.f32 %v1228, 1.0
  %v1250 = vadd.f32 %v1230, 1.0
  %v1251 = vadd.f32 %v1232, 1.0
  %v1252 = vadd.f32 %v1234, 1.0
  %v1253 = vadd.f32 %v1236, 1.0
  %v1254 = vadd.f32 %v1238, 1.0
  %v1255 = vrcp.pop %v1239
  %v1256 = vmul.f32 1.0, %v1255
  %v1257 = vrcp.pop %v1240
  %v1258 = vmul.f32 1.0, %v1257
  %v1259 = vrcp.pop %v1241
  %v1260 = vmul.f32 1.0, %v1259
  %v1261 = vrcp.pop %v1242
  %v1262 = vmul.f32 1.0, %v1261
  %v1263 = vrcp.pop %v1243
  %v1264 = vmul.f32 1.0, %v1263
  %v1265 = vrcp.pop %v1244
  %v1266 = vmul.f32 1.0, %v1265
  %v1267 = vrcp.pop %v1245
  %v1268 = vmul.f32 1.0, %v1267
  %v1269 = vrcp.pop %v1246
  %v1270 = vmul.f32 1.0, %v1269
  %v1271 = vrcp.pop %v1247
  %v1272 = vmul.f32 1.0, %v1271
  %v1273 = vrcp.pop %v1248
  %v1274 = vmul.f32 1.0, %v1273
  %v1275 = vrcp.pop %v1249
  %v1276 = vmul.f32 1.0, %v1275
  %v1277 = vrcp.pop %v1250
  %v1278 = vmul.f32 1.0, %v1277
  %v1279 = vrcp.pop %v1251
  %v1280 = vmul.f32 1.0, %v1279
  %v1281 = vrcp.pop %v1252
  %v1282 = vmul.f32 1.0, %v1281
  %v1283 = vrcp.pop %v1253
  %v1284 = vmul.f32 1.0, %v1283
  %v1285 = vrcp.pop %v1254
  %v1286 = vmul.f32 1.0, %v1285
  %vm1287 = vcmask 64512
  %1288 = vst.msk [vmem:[%s7] sm:$0xff] %vm1287, %v1256
  %1289 = vst.msk [vmem:[%s7 + $0x8] sm:$0xff] %vm1287, %v1258
  %1290 = vst.msk [vmem:[%s7 + $0x10] sm:$0xff] %vm1287, %v1260
  %1291 = vst.msk [vmem:[%s7 + $0x18] sm:$0xff] %vm1287, %v1262
  %1292 = vst.msk [vmem:[%s7 + $0x20] sm:$0xff] %vm1287, %v1264
  %1293 = vst.msk [vmem:[%s7 + $0x28] sm:$0xff] %vm1287, %v1266
  %1294 = vst.msk [vmem:[%s7 + $0x30] sm:$0xff] %vm1287, %v1268
  %1295 = vst.msk [vmem:[%s7 + $0x38] sm:$0xff] %vm1287, %v1270
  %1296 = vst.msk [vmem:[%s7 + $0x40] sm:$0xff] %vm1287, %v1272
  %1297 = vst.msk [vmem:[%s7 + $0x48] sm:$0xff] %vm1287, %v1274
  %1298 = vst.msk [vmem:[%s7 + $0x50] sm:$0xff] %vm1287, %v1276
  %1299 = vst.msk [vmem:[%s7 + $0x58] sm:$0xff] %vm1287, %v1278
  %1300 = vst.msk [vmem:[%s7 + $0x60] sm:$0xff] %vm1287, %v1280
  %1301 = vst.msk [vmem:[%s7 + $0x68] sm:$0xff] %vm1287, %v1282
  %1302 = vst.msk [vmem:[%s7 + $0x70] sm:$0xff] %vm1287, %v1284
  %1303 = vst.msk [vmem:[%s7 + $0x78] sm:$0xff] %vm1287, %v1286
  // Predicated region
  $region30: #{tpu_custom_call.1} parent=0 // pred_check
    _
  $region31: #{tpu_custom_call.1} parent=0 // pred_check_branch
    %1305 = sbr.rel (0) target = $region33
  $region32: #{tpu_custom_call.1} parent=0 // pred_region
    _
  $region33: #{tpu_custom_call.1} parent=0 // pred_fallthru
    _
  // Predicated region
  $region34: #{tpu_custom_call.1} parent=0 // pred_check
    _
  $region35: #{tpu_custom_call.1} parent=0 // pred_check_branch
    %1307 = sbr.rel (0) target = $region37
  $region36: #{tpu_custom_call.1} parent=0 // pred_region
    _
  $region37: #{tpu_custom_call.1} parent=0 // pred_fallthru
    _

</llo_original>
